<compile_context>
chip_gen: v6e
topology: v6e:2x2x1
jax: 0.10.0
libtpu: 0.0.40
codegen_flags: <defaults>
</compile_context>

<pallas_src>
import functools

import jax
import jax.numpy as jnp
from jax.experimental import pallas as pl
from jax.experimental.pallas import tpu as pltpu


def _gelu_exact(x):
    # PyTorch's default nn.GELU() is the exact erf form: 0.5*x*(1+erf(x/sqrt(2))).
    # erf via the Abramowitz & Stegun 7.1.26 polynomial (max abs err ~1.5e-7);
    # abs/mul/add/exp/where lower to VPU/EUP, reciprocal goes to the EUP slot.
    z = x * 0.7071067811865476
    az = jnp.abs(z)
    t = pl.reciprocal(1.0 + 0.3275911 * az, approx=True)
    poly = t * (0.254829592
                + t * (-0.284496736
                       + t * (1.421413741
                              + t * (-1.453152027
                                     + t * 1.061405429))))
    erf_abs = 1.0 - poly * jnp.exp(-az * az)
    erf_z = jnp.where(z < 0.0, -erf_abs, erf_abs)
    return 0.5 * x * (1.0 + erf_z)


def _ffn_step(x_ref, w1_ref, b1_ref, w2_ref, b2_ref, o_ref, acc_ref,
              *, compute_dtype):
    """One (row-tile, hidden-tile) grid step; hidden axis is the reduction."""
    j = pl.program_id(1)

    @pl.when(j == 0)
    def _():
        acc_ref[...] = jnp.zeros_like(acc_ref)

    # First matmul (MXU, bf16 inputs, f32 accumulation): (tm, D) @ (D, th).
    h = jnp.dot(x_ref[...], w1_ref[...], preferred_element_type=jnp.float32)
    h = _gelu_exact(h + b1_ref[...].astype(jnp.float32))   # f32 VPU/EUP math

    # Second matmul: accumulate this hidden block's contribution (tm, D).
    acc_ref[...] += jnp.dot(h.astype(compute_dtype), w2_ref[...],
                            preferred_element_type=jnp.float32)

    @pl.when(j == pl.num_programs(1) - 1)
    def _():
        o_ref[...] = (acc_ref[...]
                      + b2_ref[...].astype(jnp.float32)).astype(o_ref.dtype)


def _ffn_kernel_fused(x_ref, w1_ref, b1_ref, w2_ref, b2_ref, o_ref,
                      *, compute_dtype):
    # f32 output: the output block is resident across the hidden axis, so
    # accumulate directly into it (saves the (tm, D) f32 scratch + a copy).
    _ffn_step(x_ref, w1_ref, b1_ref, w2_ref, b2_ref, o_ref, o_ref,
              compute_dtype=compute_dtype)


def _ffn_kernel_scratch(x_ref, w1_ref, b1_ref, w2_ref, b2_ref, o_ref, acc_ref,
                        *, compute_dtype):
    # Non-f32 output: accumulate in a f32 VMEM scratch, cast in the epilogue.
    _ffn_step(x_ref, w1_ref, b1_ref, w2_ref, b2_ref, o_ref, acc_ref,
              compute_dtype=compute_dtype)


def _round_up(x, m):
    return (x + m - 1) // m * m


def _pick_tile(total, preferred, granule):
    """Largest multiple-of-`granule` divisor of `total` that is <= preferred,
    else the full extent (a full-extent block is always layout-legal)."""
    if total <= preferred:
        return total
    cand = preferred - (preferred % granule)
    while cand >= granule:
        if total % cand == 0:
            return cand
        cand -= granule
    return total


def _choose_row_tile(M, block_m):
    """Row tile: multiple of the bf16 sublane pack (16) / MXU tile (128),
    capped so large M always yields >= 2 row tiles (v7x megacore)."""
    granule = 128 if M >= 256 else 16
    block_m = max(granule, block_m - block_m % granule)
    if M <= block_m:
        if M > 2 * granule:
            # Enough work to split: aim for exactly 2 (padded) row tiles.
            return min(block_m, _round_up(pl.cdiv(M, 2), granule))
        return _round_up(M, granule)
    return block_m


def _default_tiles():
    """Per-generation tile / VMEM-limit defaults."""
    vmem_cap = 128 * 1024 * 1024
    try:
        info = pltpu.get_tpu_info()
        vmem_cap = int(getattr(info, "vmem_capacity_bytes", vmem_cap)) or vmem_cap
    except Exception:
        pass
    if vmem_cap <= 80 * 1024 * 1024:
        # v7x: 64 MiB physical VMEM -> leave headroom for compiler scratch.
        return 512, 1024, 48 * 1024 * 1024
    # v5e / v6e: 128 MiB physical VMEM.
    return 512, 2048, 96 * 1024 * 1024


def feed_forward(x, w1, b1, w2, b2, *,
                 block_m=None, block_h=None, matmul_dtype=jnp.bfloat16):
    """FeedForward forward pass.

    x: (..., dim).  w1: (dim, hidden).  b1: (hidden,).  w2: (hidden, dim).
    b2: (dim,).  Returns an array with the same shape/dtype as x.
    """
    orig_shape = x.shape
    D = orig_shape[-1]
    H = w1.shape[1]
    assert w1.shape == (D, H) and w2.shape == (H, D)
    assert b1.shape == (H,) and b2.shape == (D,)

    def_bm, def_bh, vmem_limit = _default_tiles()
    block_m = def_bm if block_m is None else block_m
    block_h = def_bh if block_h is None else block_h

    # Host-side bf16 cast of x: halves the x HBM->VMEM DMA bytes and removes
    # the per-hidden-step re-cast of the resident x tile inside the kernel.
    x2 = x.reshape(-1, D).astype(matmul_dtype)
    M = x2.shape[0]

    # Row tiling: pad M up to a multiple of tm (padded rows are discarded at
    # the end); hidden tiling: exact divisor of H in multiples of 128 lanes.
    tm = _choose_row_tile(M, block_m)
    m_pad = _round_up(M, tm)
    if m_pad != M:
        x2 = jnp.pad(x2, ((0, m_pad - M), (0, 0)))
    th = _pick_tile(H, block_h, 128)

    # bf16 weights: MXU-native on v5e/v6e/v7x and half the HBM->VMEM DMA bytes.
    w1c = w1.astype(matmul_dtype)
    w2c = w2.astype(matmul_dtype)
    b1_2d = b1.reshape(1, H)
    b2_2d = b2.reshape(1, D)

    out_dtype = x.dtype
    use_scratch = jnp.dtype(out_dtype) != jnp.dtype(jnp.float32)
    kernel = functools.partial(
        _ffn_kernel_scratch if use_scratch else _ffn_kernel_fused,
        compute_dtype=matmul_dtype)
    scratch_shapes = ([pltpu.VMEM((tm, D), jnp.float32)] if use_scratch else [])

    n_row_tiles = m_pad // tm
    w_itemsize = jnp.dtype(matmul_dtype).itemsize
    cost = pl.CostEstimate(
        flops=4 * m_pad * D * H,                    # two (M, D, H) matmuls
        transcendentals=m_pad * H,                  # one exp per GELU element
        bytes_accessed=(m_pad * D * w_itemsize                        # x in (bf16)
                        + n_row_tiles * (D * H * w_itemsize + H * 4   # w1 + b1 per row tile
                                         + H * D * w_itemsize + D * 4)  # w2 + b2 per row tile
                        + m_pad * D * jnp.dtype(out_dtype).itemsize))   # out

    out = pl.pallas_call(
        kernel,
        out_shape=jax.ShapeDtypeStruct((m_pad, D), out_dtype),
        grid_spec=pltpu.PrefetchScalarGridSpec(
            num_scalar_prefetch=0,
            grid=(m_pad // tm, H // th),
            in_specs=[
                pl.BlockSpec((tm, D), lambda i, j: (i, 0)),   # x rows (resident over j)
                pl.BlockSpec((D, th), lambda i, j: (0, j)),   # W1 hidden block
                pl.BlockSpec((1, th), lambda i, j: (0, j)),   # b1 hidden block
                pl.BlockSpec((th, D), lambda i, j: (j, 0)),   # W2 hidden block
                pl.BlockSpec((1, D), lambda i, j: (0, 0)),    # b2
            ],
            out_specs=pl.BlockSpec((tm, D), lambda i, j: (i, 0)),
            scratch_shapes=scratch_shapes,
        ),
        compiler_params=pltpu.CompilerParams(
            dimension_semantics=("parallel", "arbitrary"),
            vmem_limit_bytes=vmem_limit),
        cost_estimate=cost,
    )(x2, w1c, b1_2d, w2c, b2_2d)

    if m_pad != M:
        out = out[:M]
    return out.reshape(orig_shape)


def feed_forward_reference(x, w1, b1, w2, b2):
    """Pure-JAX reference matching the PyTorch forward (exact erf GELU, f32)."""
    h = jnp.dot(x, w1) + b1
    h = jax.nn.gelu(h, approximate=False)
    return jnp.dot(h, w2) + b2


if __name__ == "__main__":
    B, N, DIM, HIDDEN = 2, 8, 32, 64

    key = jax.random.PRNGKey(0)
    kx, k1, kb1, k2, kb2 = jax.random.split(key, 5)

    x = jax.random.normal(kx, (B, N, DIM), dtype=jnp.float32)
    # Deterministic synthetic parameters (shapes implied by the two nn.Linear).
    w1 = jax.random.normal(k1, (DIM, HIDDEN), dtype=jnp.float32) * 0.05
    b1 = jax.random.normal(kb1, (HIDDEN,), dtype=jnp.float32) * 0.05
    w2 = jax.random.normal(k2, (HIDDEN, DIM), dtype=jnp.float32) * 0.05
    b2 = jax.random.normal(kb2, (DIM,), dtype=jnp.float32) * 0.05

    y = feed_forward(x, w1, b1, w2, b2)
    y = jax.block_until_ready(y)

    y_ref = feed_forward_reference(x, w1, b1, w2, b2)
    assert y.shape == x.shape and y.dtype == x.dtype
    # Tolerance covers bf16 MXU inputs (f32 accumulation) + erf polynomial
    # + approx reciprocal (~2^-12 relative error in t).
    assert jnp.allclose(y, y_ref, atol=1e-2, rtol=1e-2), "mismatch vs reference"

    print("KERNEL_OK")
</pallas_src>

<mosaic_0001>
module attributes {stable_mosaic.version = 11 : i64} {
  func.func @_ffn_kernel_fused(%arg0: i32, %arg1: i32, %arg2: memref<16x32xbf16, #tpu.memory_space<vmem>>, %arg3: memref<32x64xbf16, #tpu.memory_space<vmem>>, %arg4: memref<1x64xf32, #tpu.memory_space<vmem>>, %arg5: memref<64x32xbf16, #tpu.memory_space<vmem>>, %arg6: memref<1x32xf32, #tpu.memory_space<vmem>>, %arg7: memref<16x32xf32, #tpu.memory_space<vmem>>) attributes {dimension_semantics = [#tpu.dimension_semantics<parallel>, #tpu.dimension_semantics<arbitrary>], iteration_bounds = array<i64: 1, 1>, scalar_prefetch = 0 : i64, scratch_operands = 0 : i64, tpu.core_type = #tpu.core_type<tc>, window_params = [{transform_indices = @transform_0, window_bounds = array<i64: 16, 32>}, {transform_indices = @transform_1, window_bounds = array<i64: 32, 64>}, {transform_indices = @transform_2, window_bounds = array<i64: 1, 64>}, {transform_indices = @transform_3, window_bounds = array<i64: 64, 32>}, {pipeline_mode = #tpu.pipeline_mode<synchronous>, transform_indices = @transform_4, window_bounds = array<i64: 1, 32>}, {transform_indices = @transform_5, window_bounds = array<i64: 16, 32>}]} {
    %c0_i32 = arith.constant 0 : i32
    %0 = arith.cmpi eq, %arg1, %c0_i32 : i32
    %1 = arith.extui %0 : i1 to i32
    %c0_i32_0 = arith.constant 0 : i32
    %2 = arith.cmpi ne, %1, %c0_i32_0 : i32
    scf.if %2 {
      %cst_29 = arith.constant 0.000000e+00 : f32
      %57 = vector.broadcast %cst_29 : f32 to vector<16x32xf32>
      %c0_30 = arith.constant 0 : index
      %c0_31 = arith.constant 0 : index
      %58 = vector.load %arg7[%c0_30, %c0_31] : memref<16x32xf32, #tpu.memory_space<vmem>>, vector<16x32xf32>
      tpu.vector_store %arg7[%c0_30, %c0_31], %57 {strides = array<i32>} : memref<16x32xf32, #tpu.memory_space<vmem>>, vector<16x32xf32>,
    } else {
    }
    %c0 = arith.constant 0 : index
    %c0_1 = arith.constant 0 : index
    %3 = vector.load %arg2[%c0, %c0_1] : memref<16x32xbf16, #tpu.memory_space<vmem>>, vector<16x32xbf16>
    %c0_2 = arith.constant 0 : index
    %c0_3 = arith.constant 0 : index
    %4 = vector.load %arg3[%c0_2, %c0_3] : memref<32x64xbf16, #tpu.memory_space<vmem>>, vector<32x64xbf16>
    %cst = arith.constant dense<0.000000e+00> : vector<16x64xf32>
    %5 = tpu.matmul %3, %4, %cst {dimension_numbers = #tpu.dot_dimension_numbers<[1], [0], [0], [1], [0, 0, 1, 1], [], []>} : vector<16x32xbf16>, vector<32x64xbf16>, vector<16x64xf32> -> vector<16x64xf32>
    %c0_4 = arith.constant 0 : index
    %c0_5 = arith.constant 0 : index
    %6 = vector.load %arg4[%c0_4, %c0_5] : memref<1x64xf32, #tpu.memory_space<vmem>>, vector<1x64xf32>
    %7 = vector.broadcast %6 : vector<1x64xf32> to vector<16x64xf32>
    %8 = arith.addf %5, %7 : vector<16x64xf32>
    %cst_6 = arith.constant 0.707106769 : f32
    %9 = vector.broadcast %cst_6 : f32 to vector<16x64xf32>
    %10 = arith.mulf %8, %9 : vector<16x64xf32>
    %11 = math.absf %10 : vector<16x64xf32>
    %cst_7 = arith.constant 0.327591091 : f32
    %12 = vector.broadcast %cst_7 : f32 to vector<16x64xf32>
    %13 = arith.mulf %12, %11 : vector<16x64xf32>
    %cst_8 = arith.constant 1.000000e+00 : f32
    %14 = vector.broadcast %cst_8 : f32 to vector<16x64xf32>
    %15 = arith.addf %14, %13 : vector<16x64xf32>
    %16 = tpu.reciprocal %15 {approx = true} : vector<16x64xf32> -> vector<16x64xf32>
    %cst_9 = arith.constant 1.06140542 : f32
    %17 = vector.broadcast %cst_9 : f32 to vector<16x64xf32>
    %18 = arith.mulf %16, %17 : vector<16x64xf32>
    %cst_10 = arith.constant -1.45315206 : f32
    %19 = vector.broadcast %cst_10 : f32 to vector<16x64xf32>
    %20 = arith.addf %19, %18 : vector<16x64xf32>
    %21 = arith.mulf %16, %20 : vector<16x64xf32>
    %cst_11 = arith.constant 1.42141378 : f32
    %22 = vector.broadcast %cst_11 : f32 to vector<16x64xf32>
    %23 = arith.addf %22, %21 : vector<16x64xf32>
    %24 = arith.mulf %16, %23 : vector<16x64xf32>
    %cst_12 = arith.constant -0.284496725 : f32
    %25 = vector.broadcast %cst_12 : f32 to vector<16x64xf32>
    %26 = arith.addf %25, %24 : vector<16x64xf32>
    %27 = arith.mulf %16, %26 : vector<16x64xf32>
    %cst_13 = arith.constant 0.254829586 : f32
    %28 = vector.broadcast %cst_13 : f32 to vector<16x64xf32>
    %29 = arith.addf %28, %27 : vector<16x64xf32>
    %30 = arith.mulf %16, %29 : vector<16x64xf32>
    %cst_14 = arith.constant 0.000000e+00 : f32
    %31 = vector.broadcast %cst_14 : f32 to vector<16x64xf32>
    %32 = arith.subf %31, %11 : vector<16x64xf32>
    %33 = arith.mulf %32, %11 : vector<16x64xf32>
    %34 = math.exp %33 : vector<16x64xf32>
    %35 = arith.mulf %30, %34 : vector<16x64xf32>
    %cst_15 = arith.constant 1.000000e+00 : f32
    %36 = vector.broadcast %cst_15 : f32 to vector<16x64xf32>
    %37 = arith.subf %36, %35 : vector<16x64xf32>
    %cst_16 = arith.constant 0.000000e+00 : f32
    %38 = vector.broadcast %cst_16 : f32 to vector<16x64xf32>
    %39 = arith.cmpf olt, %10, %38 : vector<16x64xf32>
    %cst_17 = arith.constant 0.000000e+00 : f32
    %40 = vector.broadcast %cst_17 : f32 to vector<16x64xf32>
    %41 = arith.subf %40, %37 : vector<16x64xf32>
    %42 = arith.select %39, %41, %37 : vector<16x64xi1>, vector<16x64xf32>
    %cst_18 = arith.constant 5.000000e-01 : f32
    %43 = vector.broadcast %cst_18 : f32 to vector<16x64xf32>
    %44 = arith.mulf %43, %8 : vector<16x64xf32>
    %cst_19 = arith.constant 1.000000e+00 : f32
    %45 = vector.broadcast %cst_19 : f32 to vector<16x64xf32>
    %46 = arith.addf %45, %42 : vector<16x64xf32>
    %47 = arith.mulf %44, %46 : vector<16x64xf32>
    %c0_20 = arith.constant 0 : index
    %c0_21 = arith.constant 0 : index
    %48 = vector.load %arg7[%c0_20, %c0_21] : memref<16x32xf32, #tpu.memory_space<vmem>>, vector<16x32xf32>
    %49 = arith.truncf %47 : vector<16x64xf32> to vector<16x64xbf16>
    %c0_22 = arith.constant 0 : index
    %c0_23 = arith.constant 0 : index
    %50 = vector.load %arg5[%c0_22, %c0_23] : memref<64x32xbf16, #tpu.memory_space<vmem>>, vector<64x32xbf16>
    %cst_24 = arith.constant dense<0.000000e+00> : vector<16x32xf32>
    %51 = tpu.matmul %49, %50, %cst_24 {dimension_numbers = #tpu.dot_dimension_numbers<[1], [0], [0], [1], [0, 0, 1, 1], [], []>} : vector<16x64xbf16>, vector<64x32xbf16>, vector<16x32xf32> -> vector<16x32xf32>
    %52 = arith.addf %48, %51 : vector<16x32xf32>
    %c0_25 = arith.constant 0 : index
    %c0_26 = arith.constant 0 : index
    %53 = vector.load %arg7[%c0_25, %c0_26] : memref<16x32xf32, #tpu.memory_space<vmem>>, vector<16x32xf32>
    tpu.vector_store %arg7[%c0_25, %c0_26], %52 {strides = array<i32>} : memref<16x32xf32, #tpu.memory_space<vmem>>, vector<16x32xf32>,
    %c0_i32_27 = arith.constant 0 : i32
    %54 = arith.cmpi eq, %arg1, %c0_i32_27 : i32
    %55 = arith.extui %54 : i1 to i32
    %c0_i32_28 = arith.constant 0 : i32
    %56 = arith.cmpi ne, %55, %c0_i32_28 : i32
    scf.if %56 {
      %c0_29 = arith.constant 0 : index
      %c0_30 = arith.constant 0 : index
      %57 = vector.load %arg7[%c0_29, %c0_30] : memref<16x32xf32, #tpu.memory_space<vmem>>, vector<16x32xf32>
      %c0_31 = arith.constant 0 : index
      %c0_32 = arith.constant 0 : index
      %58 = vector.load %arg6[%c0_31, %c0_32] : memref<1x32xf32, #tpu.memory_space<vmem>>, vector<1x32xf32>
      %59 = vector.broadcast %58 : vector<1x32xf32> to vector<16x32xf32>
      %60 = arith.addf %57, %59 : vector<16x32xf32>
      %c0_33 = arith.constant 0 : index
      %c0_34 = arith.constant 0 : index
      %61 = vector.load %arg7[%c0_33, %c0_34] : memref<16x32xf32, #tpu.memory_space<vmem>>, vector<16x32xf32>
      tpu.vector_store %arg7[%c0_33, %c0_34], %60 {strides = array<i32>} : memref<16x32xf32, #tpu.memory_space<vmem>>, vector<16x32xf32>,
    } else {
    }
    return
  }
  func.func @transform_0(%arg0: i32, %arg1: i32) -> (i32, i32) {
    %c0_i32 = arith.constant 0 : i32
    %c0_i32_0 = arith.constant 0 : i32
    return %arg0, %c0_i32 : i32, i32
  }
  func.func @transform_1(%arg0: i32, %arg1: i32) -> (i32, i32) {
    %c0_i32 = arith.constant 0 : i32
    %c0_i32_0 = arith.constant 0 : i32
    return %c0_i32, %arg1 : i32, i32
  }
  func.func @transform_2(%arg0: i32, %arg1: i32) -> (i32, i32) {
    %c0_i32 = arith.constant 0 : i32
    %c0_i32_0 = arith.constant 0 : i32
    return %c0_i32, %arg1 : i32, i32
  }
  func.func @transform_3(%arg0: i32, %arg1: i32) -> (i32, i32) {
    %c0_i32 = arith.constant 0 : i32
    %c0_i32_0 = arith.constant 0 : i32
    return %arg1, %c0_i32 : i32, i32
  }
  func.func @transform_4(%arg0: i32, %arg1: i32) -> (i32, i32) {
    %c0_i32 = arith.constant 0 : i32
    %c0_i32_0 = arith.constant 0 : i32
    %c0_i32_1 = arith.constant 0 : i32
    return %c0_i32, %c0_i32_0 : i32, i32
  }
  func.func @transform_5(%arg0: i32, %arg1: i32) -> (i32, i32) {
    %c0_i32 = arith.constant 0 : i32
    %c0_i32_0 = arith.constant 0 : i32
    return %arg0, %c0_i32 : i32, i32
  }
}

</mosaic_0001>

<llo_original>
// kernel: tpu_custom_call.1
$region0: #{tpu_custom_call.1}
  #allocation0 [shape = 'u32[]', space=smem, size = 0x4, offset = 0x4, fixed_abs, tag = 'smem constant byte address 0x4 - core index']
  #allocation1 [shape = 'u32[144,128]{1,0:T(1,128)}', space=vmem, size = 0x12000, scoped, tag = 'internal scratch']
  %s0 = inlined_call_operand.vmem [shape: bf16[16,32], index: 0, kind: input, shape index: {}]
  %s1 = inlined_call_operand.vmem [shape: bf16[32,64], index: 1, kind: input, shape index: {}]
  %s2 = inlined_call_operand.vmem [shape: f32[1,64], index: 2, kind: input, shape index: {}]
  %s3 = inlined_call_operand.vmem [shape: bf16[64,32], index: 3, kind: input, shape index: {}]
  %s4 = inlined_call_operand.vmem [shape: f32[1,32], index: 4, kind: input, shape index: {}]
  %s5 = inlined_call_operand.hbm [shape: f32[16,32], index: 5, kind: output, shape index: {}]
  %s6 = sld [smem:[#allocation0]]
  $region38: #{tpu_custom_call.1} parent=0
    _
  %s8 = ssub.s32 1, %s6
  %s9 = scalar_select 0, %s8, %s6
  $region1: #{tpu_custom_call.1} parent=0
    #allocation2 [shape = 'u8[8192]{0}', space=vmem, size = 0x2000, scoped, tag = 'output window, operand 0, single buffered']
    #allocation3 [shape = 's32[1]{0}', space=sflag, size = 0x4, scoped, tag = 'scoped memory for tpu_custom_call.1']
    %10 = vsyncpa [#allocation3], 0
    // Predicated region
    $region2: #{tpu_custom_call.1} parent=1 // pred_check
      _
    $region3: #{tpu_custom_call.1} parent=1 // pred_check_branch
      %12 = sbr.rel (0) target = $region5
    $region4: #{tpu_custom_call.1} parent=1 // pred_region
      _
    $region5: #{tpu_custom_call.1} parent=1 // pred_fallthru
      _
    // Predicated region
    $region6: #{tpu_custom_call.1} parent=1 // pred_check
      _
    $region7: #{tpu_custom_call.1} parent=1 // pred_check_branch
      %14 = sbr.rel (0) target = $region9
    $region8: #{tpu_custom_call.1} parent=1 // pred_region
      _
    $region9: #{tpu_custom_call.1} parent=1 // pred_fallthru
      _
    // Predicated region
    $region10: #{tpu_custom_call.1} parent=1 // pred_check
      _
    $region11: #{tpu_custom_call.1} parent=1 // pred_check_branch
      %16 = sbr.rel (0) target = $region13
    $region12: #{tpu_custom_call.1} parent=1 // pred_region
      _
    $region13: #{tpu_custom_call.1} parent=1 // pred_fallthru
      _
    // Predicated region
    $region14: #{tpu_custom_call.1} parent=1 // pred_check
      _
    $region15: #{tpu_custom_call.1} parent=1 // pred_check_branch
      %18 = sbr.rel (0) target = $region17
    $region16: #{tpu_custom_call.1} parent=1 // pred_region
      _
    $region17: #{tpu_custom_call.1} parent=1 // pred_fallthru
      _
    // Predicated region
    $region18: #{tpu_custom_call.1} parent=1 // pred_check
      _
    $region19: #{tpu_custom_call.1} parent=1 // pred_check_branch
      %20 = sbr.rel (0) target = $region21
    $region20: #{tpu_custom_call.1} parent=1 // pred_region
      _
    $region21: #{tpu_custom_call.1} parent=1 // pred_fallthru
      _
    %p22 = scmp.eq.s32.totalorder 0, 0
    // Predicated region
    $region22: #{tpu_custom_call.1} parent=1 // pred_check
      %p23 = pneg %p22
    $region23: #{tpu_custom_call.1} parent=1 // pred_check_branch
      %25 = sbr.rel (%p23) target = $region25
    $region24: #{tpu_custom_call.1} parent=1 // pred_region
      %vm26 = vcmask 261120
      %27 = vst.msk [vmem:[#allocation2] sm:$0xff] %vm26, 0.0
      %28 = vst.msk [vmem:[#allocation2 + $0x8] sm:$0xff] %vm26, 0.0
    $region25: #{tpu_custom_call.1} parent=1 // pred_fallthru
      _
    %v29 = vld [vmem:[%s0] sm:$0xf]
    %v30 = vld [vmem:[%s0 + $0x4] sm:$0xf]
    %v31 = vld [vmem:[%s1] sm:$0xf]
    %v32 = vld [vmem:[%s1 + $0x4] sm:$0xf]
    %v33 = vld [vmem:[%s1 + $0x8] sm:$0xf]
    %v34 = vld [vmem:[%s1 + $0xc] sm:$0xf]
    %v35 = vld [vmem:[%s2] sm:$0x1]
    %v37 = vlaneseq
    %v38 = vshrl.u32 %v37, 7
    %v39 = vsub.s32 0, %v38
    %v40 = vrot.slane %v35, %v39
    %v44 = vunpack.c.l.b16 %v29
    %v45 = vunpack.c.l.b16 %v30
    %v46 = vpack.c.b16 %v45, %v44
    %v51 = vunpack.c.l.b16 %v31
    %v52 = vunpack.c.l.b16 %v32
    %v53 = vunpack.c.l.b16 %v33
    %v54 = vunpack.c.l.b16 %v34
    %v55 = vpack.c.b16 %v52, %v51
    %v56 = vpack.c.b16 %v54, %v53
    %vm59 = vcmask 261120
    %v61 = vsel %vm59, %v46, 0
    %63 = vmatprep.subr.bf16.mxu0 0
    %64 = vmatpush1.bf16.msra.mxu0 0
    %65 = vmatprep.subr.bf16.mxu0 0
    %66 = vmatpush1.bf16.msra.mxu0 0
    %67 = vmatprep.subr.bf16.mxu0 0
    %68 = vmatpush1.bf16.msra.mxu0 0
    %69 = vmatprep.subr.bf16.mxu0 0
    %70 = vmatpush1.bf16.msra.mxu0 0
    %71 = vmatprep.subr.bf16.mxu0 0
    %72 = vmatpush1.bf16.msra.mxu0 0
    %73 = vmatprep.subr.bf16.mxu0 0
    %74 = vmatpush1.bf16.msra.mxu0 0
    %75 = vmatprep.subr.bf16.mxu0 0
    %76 = vmatpush1.bf16.msra.mxu0 %v56
    %77 = vmatprep.subr.bf16.mxu0 0
    %78 = vmatpush1.bf16.msra.mxu0 %v55
    %79 = vmatprep.subr.bf16.mxu0 0
    %80 = vmatpush2.bf16.msra.mxu0 0
    %81 = vmatprep.subr.bf16.mxu0 0
    %82 = vmatpush2.bf16.msra.mxu0 0
    %83 = vmatprep.subr.bf16.mxu0 0
    %84 = vmatpush2.bf16.msra.mxu0 0
    %85 = vmatprep.subr.bf16.mxu0 0
    %86 = vmatpush2.bf16.msra.mxu0 0
    %87 = vmatprep.subr.bf16.mxu0 0
    %88 = vmatpush2.bf16.msra.mxu0 0
    %89 = vmatprep.subr.bf16.mxu0 0
    %90 = vmatpush2.bf16.msra.mxu0 0
    %91 = vmatprep.subr.bf16.mxu0 0
    %92 = vmatpush2.bf16.msra.mxu0 0
    %93 = vmatprep.subr.bf16.mxu0 0
    %94 = vmatpush2.bf16.msra.mxu0 0
    %95 = vmatprep.mubr.bf16.mxu0 0
    %96 = vmatmul.mubr.bf16.gmra.mxu0 %v61
    %v97 = vpop.f32.mrf.mxu0
    %v98 = vadd.f32 %v40, %v97
    %v99 = vpop.f32.mrf.mxu0
    %v100 = vpop.f32.mrf.mxu0
    %v101 = vadd.f32 %v40, %v100
    %v102 = vpop.f32.mrf.mxu0
    %103 = vdwg.mxu0
    %v104 = vmul.f32 %v98, 0.70710677
    %v105 = vmul.f32 %v101, 0.70710677
    %v106 = vand.u32 2147483647, %v104
    %v107 = vand.u32 2147483647, %v105
    %v108 = vmul.f32 %v106, 0.3275911
    %v109 = vmul.f32 %v107, 0.3275911
    %v110 = vadd.f32 %v108, 1.0
    %v111 = vadd.f32 %v109, 1.0
    %v112 = vrcp.pop %v110
    %v113 = vrcp.pop %v111
    %v114 = vmul.f32 %v112, 1.0614054
    %v115 = vmul.f32 %v113, 1.0614054
    %v116 = vadd.f32 %v114, -1.4531521
    %v117 = vadd.f32 %v115, -1.4531521
    %v118 = vmul.f32 %v112, %v116
    %v119 = vmul.f32 %v113, %v117
    %v120 = vadd.f32 %v118, 1.4214138
    %v121 = vadd.f32 %v119, 1.4214138
    %v122 = vmul.f32 %v112, %v120
    %v123 = vmul.f32 %v113, %v121
    %v124 = vadd.f32 %v122, -0.28449672
    %v125 = vadd.f32 %v123, -0.28449672
    %v126 = vmul.f32 %v112, %v124
    %v127 = vmul.f32 %v113, %v125
    %v128 = vadd.f32 %v126, 0.2548296
    %v129 = vadd.f32 %v127, 0.2548296
    %v130 = vmul.f32 %v112, %v128
    %v131 = vmul.f32 %v113, %v129
    %v132 = vsub.f32 0.0, %v106
    %v133 = vsub.f32 0.0, %v107
    %v134 = vmul.f32 %v132, %v106
    %v135 = vmul.f32 %v133, %v107
    %v136 = vmul.f32 %v134, 1.442695
    %v137 = vpow.pop %v136
    %v138 = vmul.f32 %v135, 1.442695
    %v139 = vpow.pop %v138
    %v140 = vmul.f32 %v130, %v137
    %v141 = vmul.f32 %v131, %v139
    %v142 = vsub.f32 1.0, %v140
    %v143 = vsub.f32 1.0, %v141
    %vm144 = vcmp.lt.f32.partialorder %v104, 0.0
    %vm145 = vcmp.lt.f32.partialorder %v105, 0.0
    %v146 = vsub.f32 0.0, %v142
    %v147 = vsub.f32 0.0, %v143
    %v148 = vsel %vm144, %v146, %v142
    %v149 = vsel %vm145, %v147, %v143
    %v150 = vmul.f32 %v98, 0.5
    %v151 = vmul.f32 %v101, 0.5
    %v152 = vadd.f32 %v148, 1.0
    %v153 = vadd.f32 %v149, 1.0
    %v154 = vmul.f32 %v150, %v152
    %v155 = vmul.f32 %v151, %v153
    %v156 = vld [vmem:[#allocation2] sm:$0xff]
    %v157 = vld [vmem:[#allocation2 + $0x8] sm:$0xff]
    %v158 = vpack.c.bf16 %v155, %v154
    %v159 = vld [vmem:[%s3] sm:$0xf]
    %v160 = vld [vmem:[%s3 + $0x4] sm:$0xf]
    %v161 = vld [vmem:[%s3 + $0x8] sm:$0xf]
    %v162 = vld [vmem:[%s3 + $0xc] sm:$0xf]
    %v163 = vld [vmem:[%s3 + $0x10] sm:$0xf]
    %v164 = vld [vmem:[%s3 + $0x14] sm:$0xf]
    %v165 = vld [vmem:[%s3 + $0x18] sm:$0xf]
    %v166 = vld [vmem:[%s3 + $0x1c] sm:$0xf]
    %v175 = vunpack.c.l.b16 %v159
    %v176 = vunpack.c.l.b16 %v160
    %v177 = vunpack.c.l.b16 %v161
    %v178 = vunpack.c.l.b16 %v162
    %v179 = vunpack.c.l.b16 %v163
    %v180 = vunpack.c.l.b16 %v164
    %v181 = vunpack.c.l.b16 %v165
    %v182 = vunpack.c.l.b16 %v166
    %v183 = vpack.c.b16 %v176, %v175
    %v184 = vpack.c.b16 %v178, %v177
    %v185 = vpack.c.b16 %v180, %v179
    %v186 = vpack.c.b16 %v182, %v181
    %vm191 = vcmask 523264
    %v193 = vsel %vm191, %v158, 0
    %195 = vmatprep.subr.bf16.mxu0 0
    %196 = vmatpush1.bf16.msra.mxu0 0
    %197 = vmatprep.subr.bf16.mxu0 0
    %198 = vmatpush1.bf16.msra.mxu0 0
    %199 = vmatprep.subr.bf16.mxu0 0
    %200 = vmatpush1.bf16.msra.mxu0 0
    %201 = vmatprep.subr.bf16.mxu0 0
    %202 = vmatpush1.bf16.msra.mxu0 0
    %203 = vmatprep.subr.bf16.mxu0 0
    %204 = vmatpush1.bf16.msra.mxu0 %v186
    %205 = vmatprep.subr.bf16.mxu0 0
    %206 = vmatpush1.bf16.msra.mxu0 %v185
    %207 = vmatprep.subr.bf16.mxu0 0
    %208 = vmatpush1.bf16.msra.mxu0 %v184
    %209 = vmatprep.subr.bf16.mxu0 0
    %210 = vmatpush1.bf16.msra.mxu0 %v183
    %211 = vmatprep.subr.bf16.mxu0 0
    %212 = vmatpush2.bf16.msra.mxu0 0
    %213 = vmatprep.subr.bf16.mxu0 0
    %214 = vmatpush2.bf16.msra.mxu0 0
    %215 = vmatprep.subr.bf16.mxu0 0
    %216 = vmatpush2.bf16.msra.mxu0 0
    %217 = vmatprep.subr.bf16.mxu0 0
    %218 = vmatpush2.bf16.msra.mxu0 0
    %219 = vmatprep.subr.bf16.mxu0 0
    %220 = vmatpush2.bf16.msra.mxu0 0
    %221 = vmatprep.subr.bf16.mxu0 0
    %222 = vmatpush2.bf16.msra.mxu0 0
    %223 = vmatprep.subr.bf16.mxu0 0
    %224 = vmatpush2.bf16.msra.mxu0 0
    %225 = vmatprep.subr.bf16.mxu0 0
    %226 = vmatpush2.bf16.msra.mxu0 0
    %227 = vmatprep.mubr.bf16.mxu0 0
    %228 = vmatmul.mubr.bf16.gmra.mxu0 %v193
    %v229 = vpop.f32.mrf.mxu0
    %v230 = vadd.f32 0.0, %v229
    %v231 = vpop.f32.mrf.mxu0
    %v232 = vpop.f32.mrf.mxu0
    %v233 = vadd.f32 0.0, %v232
    %v234 = vpop.f32.mrf.mxu0
    %235 = vdwg.mxu0
    %v236 = vadd.f32 %v156, %v230
    %v237 = vadd.f32 %v157, %v233
    %238 = vst.msk [vmem:[#allocation2] sm:$0xff] %vm59, %v236
    %239 = vst.msk [vmem:[#allocation2 + $0x8] sm:$0xff] %vm59, %v237
    // Predicated region
    $region26: #{tpu_custom_call.1} parent=1 // pred_check
      %p240 = pneg %p22
    $region27: #{tpu_custom_call.1} parent=1 // pred_check_branch
      %242 = sbr.rel (%p240) target = $region29
    $region28: #{tpu_custom_call.1} parent=1 // pred_region
      %v243 = vld [vmem:[#allocation2] sm:$0xff]
      %v244 = vld [vmem:[#allocation2 + $0x8] sm:$0xff]
      %v245 = vld [vmem:[%s4] sm:$0x1]
      %v247 = vlaneseq
      %v248 = vshrl.u32 %v247, 7
      %v249 = vsub.s32 0, %v248
      %v250 = vrot.slane %v245, %v249
      %v252 = vadd.f32 %v243, %v250
      %v253 = vadd.f32 %v244, %v250
      %254 = vst.msk [vmem:[#allocation2] sm:$0xff] %vm59, %v252
      %255 = vst.msk [vmem:[#allocation2 + $0x8] sm:$0xff] %vm59, %v253
    $region29: #{tpu_custom_call.1} parent=1 // pred_fallthru
      _
    // Predicated region
    $region30: #{tpu_custom_call.1} parent=1 // pred_check
      _
    $region31: #{tpu_custom_call.1} parent=1 // pred_check_branch
      %257 = sbr.rel (0) target = $region33
    $region32: #{tpu_custom_call.1} parent=1 // pred_region
      %s259 = ssub.s32 256, 256
      %260 = vsyncadd [#allocation3], %s259
      %s261 = sshll.u32 [#allocation2], 4
      %s262 = int_to_ptr.vmem [resolvable:$true] %s261
      %267 = dma.vmem_to_hbm [thread:$0]  %s262, 256, %s5, [#allocation3], 128, 128, 8
    $region33: #{tpu_custom_call.1} parent=1 // pred_fallthru
      _
    // Predicated region
    $region34: #{tpu_custom_call.1} parent=1 // pred_check
      _
    $region35: #{tpu_custom_call.1} parent=1 // pred_check_branch
      %269 = sbr.rel (0) target = $region37
    $region36: #{tpu_custom_call.1} parent=1 // pred_region
      %270 = dma.done [#allocation3], 256
    $region37: #{tpu_custom_call.1} parent=1 // pred_fallthru
      _
    %271 = vsyncpa [#allocation3], 1

</llo_original>
